<compile_context>
chip_gen: v5e
topology: v5e:2x2
jax: 0.10.0
libtpu: 0.0.40
codegen_flags: <defaults>
</compile_context>

<pallas_src>
import functools

import jax
import jax.numpy as jnp
from jax.experimental import pallas as pl
from jax.experimental.pallas import tpu as pltpu

LANE = 128


def _round_up(n, m):
    return ((n + m - 1) // m) * m


def _pad2d(a, rows, cols):
    return jnp.pad(a, ((0, rows - a.shape[0]), (0, cols - a.shape[1])))


# ----------------------------------------------------------------------------
# Kernel
# ----------------------------------------------------------------------------
def ddcontrolflow_kernel(x_ref, w1_ref, b1_ref, w2_ref, b2_ref, w3_ref, b3_ref,
                         o_ref):
    # In-kernel cast of x to bf16 (wrapper passes padded f32).
    x_lo = x_ref[...].astype(jnp.bfloat16)

    # fc1 (bf16 operands, f32 accumulate) + bias + ReLU, all in f32.
    h = jnp.dot(x_lo, w1_ref[...],
                preferred_element_type=jnp.float32) + b1_ref[...]
    h = jnp.maximum(h, 0.0)

    # Data-dependent branch condition.  h >= 0 and padded rows/cols of h are
    # exactly 0, so sum(h) > 0  <=>  mean(h) > 0 over the true activations.
    # Kept as a (1, 1) tile so the select is a plain broadcast blend.
    s = jnp.sum(h, keepdims=True)                 # (1, 1)
    sel = (s > 0.0).astype(jnp.float32)           # 1.0 -> fc2, 0.0 -> fc3

    h_lo = h.astype(jnp.bfloat16)                 # back to bf16 for the MXU

    # Compute both branch outputs; at 128x128 the "wasted" dot is ~2 vmatmul
    # pushes, cheaper than serializing the second dot behind the scalar sync.
    o2 = jnp.dot(h_lo, w2_ref[...],
                 preferred_element_type=jnp.float32) + b2_ref[...]
    o3 = jnp.dot(h_lo, w3_ref[...],
                 preferred_element_type=jnp.float32) + b3_ref[...]

    o_ref[...] = (sel * o2 + (1.0 - sel) * o3).astype(o_ref.dtype)


# ----------------------------------------------------------------------------
# One-time parameter preparation (hoisted out of the per-call path)
# ----------------------------------------------------------------------------
def prepare_params(params):
    """Transpose / 128-lane zero-pad / cast the PyTorch-convention params once.

    params: {"w1": [hid, in], "b1": [hid], "w2": [out, hid], "b2": [out],
             "w3": [out, hid], "b3": [out]}  (all f32).
    Returns (prepped_dict_of_device_arrays, output_size).
    """
    hidden, in_size = params["w1"].shape
    out_size = params["w2"].shape[0]
    in_p = _round_up(in_size, LANE)
    hid_p = _round_up(hidden, LANE)
    out_p = _round_up(out_size, LANE)

    # Zero padding is semantically inert: padded x/weight entries contribute 0,
    # padded hidden columns are relu(0 + 0) = 0, padded output cols are sliced.
    prepped = {
        "w1t": _pad2d(params["w1"].T, in_p, hid_p).astype(jnp.bfloat16),
        "w2t": _pad2d(params["w2"].T, hid_p, out_p).astype(jnp.bfloat16),
        "w3t": _pad2d(params["w3"].T, hid_p, out_p).astype(jnp.bfloat16),
        "b1": _pad2d(params["b1"].reshape(1, -1), 1, hid_p).astype(jnp.float32),
        "b2": _pad2d(params["b2"].reshape(1, -1), 1, out_p).astype(jnp.float32),
        "b3": _pad2d(params["b3"].reshape(1, -1), 1, out_p).astype(jnp.float32),
    }
    prepped = jax.tree_util.tree_map(jnp.asarray, prepped)
    return prepped, out_size


# ----------------------------------------------------------------------------
# Forward wrapper
# ----------------------------------------------------------------------------
@functools.partial(jax.jit, static_argnames=("out_size",))
def ddcontrolflow_forward(x, prepped, *, out_size):
    """x: [B, input_size] float32.  prepped: output of prepare_params().
    Returns [B, output_size] float32."""
    B, in_size = x.shape
    in_p, hid_p = prepped["w1t"].shape
    out_p = prepped["w2t"].shape[1]

    # Only per-call prep left: zero-pad x's feature dim to 128 lanes (f32).
    xp = _pad2d(x, B, in_p)

    vmem = pl.BlockSpec(memory_space=pltpu.MemorySpace.VMEM)
    cost = pl.CostEstimate(
        flops=2 * B * (in_p * hid_p + 2 * hid_p * out_p),
        transcendentals=0,
        bytes_accessed=(4 * B * in_p                       # x (f32)
                        + 2 * (in_p * hid_p + 2 * hid_p * out_p)  # bf16 weights
                        + 4 * (hid_p + 2 * out_p)          # f32 biases
                        + 4 * B * out_p),                  # output (f32)
    )

    out_padded = pl.pallas_call(
        ddcontrolflow_kernel,
        out_shape=jax.ShapeDtypeStruct((B, out_p), jnp.float32),
        in_specs=[vmem] * 7,
        out_specs=vmem,
        cost_estimate=cost,
    )(xp, prepped["w1t"], prepped["b1"], prepped["w2t"], prepped["b2"],
      prepped["w3t"], prepped["b3"])

    return out_padded[:, :out_size]


# ----------------------------------------------------------------------------
# Init + reference
# ----------------------------------------------------------------------------
def init_params(key, input_size, hidden_size, output_size):
    """PyTorch-style uniform(-1/sqrt(fan_in), 1/sqrt(fan_in)) init."""
    ks = jax.random.split(key, 6)

    def lin(kw, kb, fan_in, fan_out):
        bound = 1.0 / jnp.sqrt(fan_in)
        w = jax.random.uniform(kw, (fan_out, fan_in), jnp.float32, -bound, bound)
        b = jax.random.uniform(kb, (fan_out,), jnp.float32, -bound, bound)
        return w, b

    w1, b1 = lin(ks[0], ks[1], input_size, hidden_size)
    w2, b2 = lin(ks[2], ks[3], hidden_size, output_size)
    w3, b3 = lin(ks[4], ks[5], hidden_size, output_size)
    return {"w1": w1, "b1": b1, "w2": w2, "b2": b2, "w3": w3, "b3": b3}


def reference_forward(x, params):
    """Pure-JAX f32 reference mirroring the PyTorch forward."""
    h = jnp.maximum(x @ params["w1"].T + params["b1"], 0.0)
    branch_fc2 = h @ params["w2"].T + params["b2"]
    branch_fc3 = h @ params["w3"].T + params["b3"]
    return jnp.where(jnp.mean(h) > 0.0, branch_fc2, branch_fc3)


if __name__ == "__main__":
    input_size, hidden_size, output_size = 32, 32, 16
    batch = 8

    key = jax.random.PRNGKey(0)
    x_key, p_key = jax.random.split(key)
    x = jax.random.normal(x_key, (batch, input_size), jnp.float32)
    params = init_params(p_key, input_size, hidden_size, output_size)

    # One-time weight preparation (the per-call hot path only pads x).
    prepped, out_size = prepare_params(params)

    # --- test 1: normal inputs (exercises the fc2 / mean>0 branch) ---
    out = jax.block_until_ready(
        ddcontrolflow_forward(x, prepped, out_size=out_size))
    ref = reference_forward(x, params)
    assert out.shape == (batch, output_size)
    # bf16 MXU operands with f32 accumulation -> small quantization error vs
    # the pure-f32 reference.
    assert jnp.allclose(out, ref, atol=2e-2, rtol=2e-2), "fc2 branch mismatch"

    # --- test 2: force the fc3 / mean<=0 branch (all pre-activations <= 0) ---
    params_neg = dict(params)
    params_neg["b1"] = params["b1"] - 10.0  # drives every ReLU input below 0
    prepped_neg, _ = prepare_params(params_neg)
    out_neg = jax.block_until_ready(
        ddcontrolflow_forward(x, prepped_neg, out_size=out_size))
    ref_neg = reference_forward(x, params_neg)
    assert out_neg.shape == (batch, output_size)
    # h == 0 here, so the kernel output is exactly the f32 fc3 bias.
    assert jnp.allclose(out_neg, ref_neg, atol=1e-6, rtol=1e-6), \
        "fc3 branch mismatch"

    print("KERNEL_OK")
</pallas_src>

<mosaic_0001>
module attributes {stable_mosaic.version = 11 : i64} {
  func.func @ddcontrolflow_kernel(%arg0: memref<8x128xf32, #tpu.memory_space<vmem>>, %arg1: memref<128x128xbf16, #tpu.memory_space<vmem>>, %arg2: memref<1x128xf32, #tpu.memory_space<vmem>>, %arg3: memref<128x128xbf16, #tpu.memory_space<vmem>>, %arg4: memref<1x128xf32, #tpu.memory_space<vmem>>, %arg5: memref<128x128xbf16, #tpu.memory_space<vmem>>, %arg6: memref<1x128xf32, #tpu.memory_space<vmem>>, %arg7: memref<8x128xf32, #tpu.memory_space<vmem>>) attributes {dimension_semantics = [], scalar_prefetch = 0 : i64, scratch_operands = 0 : i64, tpu.core_type = #tpu.core_type<tc>} {
    %c0 = arith.constant 0 : index
    %c0_0 = arith.constant 0 : index
    %0 = vector.load %arg0[%c0, %c0_0] : memref<8x128xf32, #tpu.memory_space<vmem>>, vector<8x128xf32>
    %1 = arith.truncf %0 : vector<8x128xf32> to vector<8x128xbf16>
    %c0_1 = arith.constant 0 : index
    %c0_2 = arith.constant 0 : index
    %2 = vector.load %arg1[%c0_1, %c0_2] : memref<128x128xbf16, #tpu.memory_space<vmem>>, vector<128x128xbf16>
    %cst = arith.constant dense<0.000000e+00> : vector<8x128xf32>
    %3 = tpu.matmul %1, %2, %cst {dimension_numbers = #tpu.dot_dimension_numbers<[1], [0], [0], [1], [0, 0, 1, 1], [], []>} : vector<8x128xbf16>, vector<128x128xbf16>, vector<8x128xf32> -> vector<8x128xf32>
    %c0_3 = arith.constant 0 : index
    %c0_4 = arith.constant 0 : index
    %4 = vector.load %arg2[%c0_3, %c0_4] : memref<1x128xf32, #tpu.memory_space<vmem>>, vector<1x128xf32>
    %5 = vector.broadcast %4 : vector<1x128xf32> to vector<8x128xf32>
    %6 = arith.addf %3, %5 : vector<8x128xf32>
    %cst_5 = arith.constant 0.000000e+00 : f32
    %7 = vector.broadcast %cst_5 : f32 to vector<8x128xf32>
    %8 = arith.maximumf %6, %7 : vector<8x128xf32>
    %9 = vector.shape_cast %8 : vector<8x128xf32> to vector<1x8x128xf32>
    %cst_6 = arith.constant dense<0.000000e+00> : vector<1xf32>
    %10 = vector.multi_reduction <add>, %9, %cst_6 [1, 2] : vector<1x8x128xf32> to vector<1xf32>
    %11 = vector.shape_cast %10 : vector<1xf32> to vector<1x1x1xf32>
    %12 = vector.extract %11[0, 0, 0] : f32 from vector<1x1x1xf32>
    %13 = vector.broadcast %12 : f32 to vector<1x1xf32>
    %cst_7 = arith.constant 0.000000e+00 : f32
    %14 = vector.broadcast %cst_7 : f32 to vector<1x1xf32>
    %15 = arith.cmpf ogt, %13, %14 : vector<1x1xf32>
    %16 = arith.extui %15 : vector<1x1xi1> to vector<1x1xi32>
    %17 = arith.sitofp %16 : vector<1x1xi32> to vector<1x1xf32>
    %18 = arith.truncf %8 : vector<8x128xf32> to vector<8x128xbf16>
    %c0_8 = arith.constant 0 : index
    %c0_9 = arith.constant 0 : index
    %19 = vector.load %arg3[%c0_8, %c0_9] : memref<128x128xbf16, #tpu.memory_space<vmem>>, vector<128x128xbf16>
    %cst_10 = arith.constant dense<0.000000e+00> : vector<8x128xf32>
    %20 = tpu.matmul %18, %19, %cst_10 {dimension_numbers = #tpu.dot_dimension_numbers<[1], [0], [0], [1], [0, 0, 1, 1], [], []>} : vector<8x128xbf16>, vector<128x128xbf16>, vector<8x128xf32> -> vector<8x128xf32>
    %c0_11 = arith.constant 0 : index
    %c0_12 = arith.constant 0 : index
    %21 = vector.load %arg4[%c0_11, %c0_12] : memref<1x128xf32, #tpu.memory_space<vmem>>, vector<1x128xf32>
    %22 = vector.broadcast %21 : vector<1x128xf32> to vector<8x128xf32>
    %23 = arith.addf %20, %22 : vector<8x128xf32>
    %c0_13 = arith.constant 0 : index
    %c0_14 = arith.constant 0 : index
    %24 = vector.load %arg5[%c0_13, %c0_14] : memref<128x128xbf16, #tpu.memory_space<vmem>>, vector<128x128xbf16>
    %cst_15 = arith.constant dense<0.000000e+00> : vector<8x128xf32>
    %25 = tpu.matmul %18, %24, %cst_15 {dimension_numbers = #tpu.dot_dimension_numbers<[1], [0], [0], [1], [0, 0, 1, 1], [], []>} : vector<8x128xbf16>, vector<128x128xbf16>, vector<8x128xf32> -> vector<8x128xf32>
    %c0_16 = arith.constant 0 : index
    %c0_17 = arith.constant 0 : index
    %26 = vector.load %arg6[%c0_16, %c0_17] : memref<1x128xf32, #tpu.memory_space<vmem>>, vector<1x128xf32>
    %27 = vector.broadcast %26 : vector<1x128xf32> to vector<8x128xf32>
    %28 = arith.addf %25, %27 : vector<8x128xf32>
    %29 = vector.broadcast %17 : vector<1x1xf32> to vector<8x128xf32>
    %30 = arith.mulf %29, %23 : vector<8x128xf32>
    %cst_18 = arith.constant 1.000000e+00 : f32
    %31 = vector.broadcast %cst_18 : f32 to vector<1x1xf32>
    %32 = arith.subf %31, %17 : vector<1x1xf32>
    %33 = vector.broadcast %32 : vector<1x1xf32> to vector<8x128xf32>
    %34 = arith.mulf %33, %28 : vector<8x128xf32>
    %35 = arith.addf %30, %34 : vector<8x128xf32>
    %c0_19 = arith.constant 0 : index
    %c0_20 = arith.constant 0 : index
    %36 = vector.load %arg7[%c0_19, %c0_20] : memref<8x128xf32, #tpu.memory_space<vmem>>, vector<8x128xf32>
    tpu.vector_store %arg7[%c0_19, %c0_20], %35 {strides = array<i32>} : memref<8x128xf32, #tpu.memory_space<vmem>>, vector<8x128xf32>,
    return
  }
}

</mosaic_0001>

<llo_original>
// kernel: ddcontrolflow_forward.1
$region0: #{ddcontrolflow_forward.1}
  #allocation0 [shape = 'u32[]', space=smem, size = 0x4, offset = 0x4, fixed_abs, tag = 'smem constant byte address 0x4 - core index']
  #allocation1 [shape = 'u32[72,128]{1,0:T(1,128)}', space=vmem, size = 0x9000, scoped, tag = 'internal scratch']
  %s0 = inlined_call_operand.vmem [shape: f32[8,128], index: 0, kind: input, shape index: {}]
  %s1 = inlined_call_operand.hbm [shape: bf16[128,128], index: 1, kind: input, shape index: {}]
  %s2 = inlined_call_operand.vmem [shape: f32[1,128], index: 2, kind: input, shape index: {}]
  %s3 = inlined_call_operand.hbm [shape: bf16[128,128], index: 3, kind: input, shape index: {}]
  %s4 = inlined_call_operand.vmem [shape: f32[1,128], index: 4, kind: input, shape index: {}]
  %s5 = inlined_call_operand.hbm [shape: bf16[128,128], index: 5, kind: input, shape index: {}]
  %s6 = inlined_call_operand.vmem [shape: f32[1,128], index: 6, kind: input, shape index: {}]
  %s7 = inlined_call_operand.hbm [shape: f32[8,128], index: 7, kind: output, shape index: {}]
  %s8 = sld [smem:[#allocation0]]
  $region50: #{ddcontrolflow_forward.1} parent=0
    _
  %s10 = ssub.s32 1, %s8
  %s11 = scalar_select 0, %s10, %s8
  $region1: #{ddcontrolflow_forward.1} parent=0
    #allocation2 [shape = 'u8[32768]{0}', space=vmem, size = 0x8000, scoped, tag = 'input window, operand 1, single buffered']
    #allocation3 [shape = 's32[1]{0}', space=sflag, size = 0x4, scoped, tag = 'scoped memory for ddcontrolflow_forward.1']
    #allocation4 [shape = 's32[1]{0}', space=sflag, size = 0x4, scoped, tag = 'scoped memory for ddcontrolflow_forward.1']
    #allocation5 [shape = 'u8[32768]{0}', space=vmem, size = 0x8000, scoped, tag = 'input window, operand 3, single buffered']
    #allocation6 [shape = 's32[1]{0}', space=sflag, size = 0x4, scoped, tag = 'scoped memory for ddcontrolflow_forward.1']
    #allocation7 [shape = 'u8[32768]{0}', space=vmem, size = 0x8000, scoped, tag = 'input window, operand 5, single buffered']
    #allocation8 [shape = 'u8[4096]{0}', space=vmem, size = 0x1000, scoped, tag = 'output window, operand 0, single buffered']
    %12 = vsyncpa [#allocation3], 0
    %13 = vsyncpa [#allocation6], 0
    %14 = vsyncpa [#allocation4], 0
    // Predicated region
    $region2: #{ddcontrolflow_forward.1} parent=1 // pred_check
      _
    $region3: #{ddcontrolflow_forward.1} parent=1 // pred_check_branch
      %16 = sbr.rel (0) target = $region5
    $region4: #{ddcontrolflow_forward.1} parent=1 // pred_region
      _
    $region5: #{ddcontrolflow_forward.1} parent=1 // pred_fallthru
      _
    // Predicated region
    $region6: #{ddcontrolflow_forward.1} parent=1 // pred_check
      _
    $region7: #{ddcontrolflow_forward.1} parent=1 // pred_check_branch
      %18 = sbr.rel (0) target = $region9
    $region8: #{ddcontrolflow_forward.1} parent=1 // pred_region
      %20 = vsyncadd [#allocation3], 0
      %s21 = sshll.u32 %s1, 4
      %s22 = int_to_ptr.hbm [resolvable:$true] %s21
      %s23 = sshll.u32 [#allocation2], 4
      %s24 = int_to_ptr.vmem [resolvable:$true] %s23
      %29 = dma.hbm_to_vmem [thread:$0]  %s22, 1024, %s24, [#allocation3], 64, 64, 4
    $region9: #{ddcontrolflow_forward.1} parent=1 // pred_fallthru
      _
    // Predicated region
    $region10: #{ddcontrolflow_forward.1} parent=1 // pred_check
      _
    $region11: #{ddcontrolflow_forward.1} parent=1 // pred_check_branch
      %31 = sbr.rel (0) target = $region13
    $region12: #{ddcontrolflow_forward.1} parent=1 // pred_region
      _
    $region13: #{ddcontrolflow_forward.1} parent=1 // pred_fallthru
      _
    // Predicated region
    $region14: #{ddcontrolflow_forward.1} parent=1 // pred_check
      _
    $region15: #{ddcontrolflow_forward.1} parent=1 // pred_check_branch
      %33 = sbr.rel (0) target = $region17
    $region16: #{ddcontrolflow_forward.1} parent=1 // pred_region
      %35 = vsyncadd [#allocation6], 0
      %s36 = sshll.u32 %s3, 4
      %s37 = int_to_ptr.hbm [resolvable:$true] %s36
      %s38 = sshll.u32 [#allocation5], 4
      %s39 = int_to_ptr.vmem [resolvable:$true] %s38
      %44 = dma.hbm_to_vmem [thread:$0]  %s37, 1024, %s39, [#allocation6], 64, 64, 4
    $region17: #{ddcontrolflow_forward.1} parent=1 // pred_fallthru
      _
    // Predicated region
    $region18: #{ddcontrolflow_forward.1} parent=1 // pred_check
      _
    $region19: #{ddcontrolflow_forward.1} parent=1 // pred_check_branch
      %46 = sbr.rel (0) target = $region21
    $region20: #{ddcontrolflow_forward.1} parent=1 // pred_region
      _
    $region21: #{ddcontrolflow_forward.1} parent=1 // pred_fallthru
      _
    // Predicated region
    $region22: #{ddcontrolflow_forward.1} parent=1 // pred_check
      _
    $region23: #{ddcontrolflow_forward.1} parent=1 // pred_check_branch
      %48 = sbr.rel (0) target = $region25
    $region24: #{ddcontrolflow_forward.1} parent=1 // pred_region
      %50 = vsyncadd [#allocation6], 0
      %s51 = sshll.u32 %s5, 4
      %s52 = int_to_ptr.hbm [resolvable:$true] %s51
      %s53 = sshll.u32 [#allocation7], 4
      %s54 = int_to_ptr.vmem [resolvable:$true] %s53
      %59 = dma.hbm_to_vmem [thread:$0]  %s52, 1024, %s54, [#allocation6], 64, 64, 4
    $region25: #{ddcontrolflow_forward.1} parent=1 // pred_fallthru
      _
    // Predicated region
    $region26: #{ddcontrolflow_forward.1} parent=1 // pred_check
      _
    $region27: #{ddcontrolflow_forward.1} parent=1 // pred_check_branch
      %61 = sbr.rel (0) target = $region29
    $region28: #{ddcontrolflow_forward.1} parent=1 // pred_region
      _
    $region29: #{ddcontrolflow_forward.1} parent=1 // pred_fallthru
      _
    // Predicated region
    $region30: #{ddcontrolflow_forward.1} parent=1 // pred_check
      _
    $region31: #{ddcontrolflow_forward.1} parent=1 // pred_check_branch
      %63 = sbr.rel (0) target = $region33
    $region32: #{ddcontrolflow_forward.1} parent=1 // pred_region
      %65 = dma.done [#allocation3], 1024
    $region33: #{ddcontrolflow_forward.1} parent=1 // pred_fallthru
      _
    // Predicated region
    $region34: #{ddcontrolflow_forward.1} parent=1 // pred_check
      _
    $region35: #{ddcontrolflow_forward.1} parent=1 // pred_check_branch
      %67 = sbr.rel (0) target = $region37
    $region36: #{ddcontrolflow_forward.1} parent=1 // pred_region
      %69 = dma.done [#allocation6], 1024
    $region37: #{ddcontrolflow_forward.1} parent=1 // pred_fallthru
      _
    // Predicated region
    $region38: #{ddcontrolflow_forward.1} parent=1 // pred_check
      _
    $region39: #{ddcontrolflow_forward.1} parent=1 // pred_check_branch
      %71 = sbr.rel (0) target = $region41
    $region40: #{ddcontrolflow_forward.1} parent=1 // pred_region
      %73 = dma.done [#allocation6], 1024
    $region41: #{ddcontrolflow_forward.1} parent=1 // pred_fallthru
      _
    %v74 = vld [vmem:[%s0] sm:$0xff]
    %v75 = vpack.c.bf16 %v74, %v74
    %v76 = vld [vmem:[#allocation2] sm:$0xf]
    %v77 = vld [vmem:[#allocation2 + $0x4] sm:$0xf]
    %v78 = vld [vmem:[#allocation2 + $0x8] sm:$0xf]
    %v79 = vld [vmem:[#allocation2 + $0xc] sm:$0xf]
    %v80 = vld [vmem:[#allocation2 + $0x10] sm:$0xf]
    %v81 = vld [vmem:[#allocation2 + $0x14] sm:$0xf]
    %v82 = vld [vmem:[#allocation2 + $0x18] sm:$0xf]
    %v83 = vld [vmem:[#allocation2 + $0x1c] sm:$0xf]
    %v84 = vld [vmem:[#allocation2 + $0x20] sm:$0xf]
    %v85 = vld [vmem:[#allocation2 + $0x24] sm:$0xf]
    %v86 = vld [vmem:[#allocation2 + $0x28] sm:$0xf]
    %v87 = vld [vmem:[#allocation2 + $0x2c] sm:$0xf]
    %v88 = vld [vmem:[#allocation2 + $0x30] sm:$0xf]
    %v89 = vld [vmem:[#allocation2 + $0x34] sm:$0xf]
    %v90 = vld [vmem:[#allocation2 + $0x38] sm:$0xf]
    %v91 = vld [vmem:[#allocation2 + $0x3c] sm:$0xf]
    %v92 = vld [vmem:[%s2] sm:$0x1]
    %v94 = vperm.slane %v92, 0
    %v112 = vunpack.c.l.b16 %v76
    %v113 = vunpack.c.l.b16 %v77
    %v114 = vunpack.c.l.b16 %v78
    %v115 = vunpack.c.l.b16 %v79
    %v116 = vunpack.c.l.b16 %v80
    %v117 = vunpack.c.l.b16 %v81
    %v118 = vunpack.c.l.b16 %v82
    %v119 = vunpack.c.l.b16 %v83
    %v120 = vunpack.c.l.b16 %v84
    %v121 = vunpack.c.l.b16 %v85
    %v122 = vunpack.c.l.b16 %v86
    %v123 = vunpack.c.l.b16 %v87
    %v124 = vunpack.c.l.b16 %v88
    %v125 = vunpack.c.l.b16 %v89
    %v126 = vunpack.c.l.b16 %v90
    %v127 = vunpack.c.l.b16 %v91
    %v128 = vpack.c.b16 %v113, %v112
    %v129 = vpack.c.b16 %v115, %v114
    %v130 = vpack.c.b16 %v117, %v116
    %v131 = vpack.c.b16 %v119, %v118
    %v132 = vpack.c.b16 %v121, %v120
    %v133 = vpack.c.b16 %v123, %v122
    %v134 = vpack.c.b16 %v125, %v124
    %v135 = vpack.c.b16 %v127, %v126
    %144 = vmatpush.bf16.msra.mxu0 %v135
    %145 = vmatpush.bf16.msra.mxu0 %v134
    %146 = vmatpush.bf16.msra.mxu0 %v133
    %147 = vmatpush.bf16.msra.mxu0 %v132
    %148 = vmatpush.bf16.msra.mxu0 %v131
    %149 = vmatpush.bf16.msra.mxu0 %v130
    %150 = vmatpush.bf16.msra.mxu0 %v129
    %151 = vmatpush.bf16.msra.mxu0 %v128
    %152 = vmatmul.bf16.gmra.mxu0 %v75
    %v153 = vpop.f32.mrf.mxu0
    %v154 = vadd.f32 %v94, %v153
    %v155 = vpop.f32.mrf.mxu0
    %156 = vdwg.mxu0
    %v157 = vmax.f32 %v154, 0.0
    %158 = vadd.xlane.f32.xlu0 %v157
    %v159 = vpop.xlane.xlu0 %158
    %v160 = vrot.slane %v159, 4
    %v161 = vadd.f32 %v159, %v160
    %v162 = vrot.slane %v161, 2
    %v163 = vadd.f32 %v161, %v162
    %v164 = vrot.slane %v163, 1
    %v165 = vadd.f32 %v163, %v164
    %s166 = vtos %v165
    %v167 = vstv %s166
    %vm168 = vcmp.gt.f32.partialorder %v167, 0.0
    %v169 = vsel %vm168, 1, 0
    %v170 = vcvt.s32.f32 %v169
    %v171 = vpack.c.bf16 %v157, %v157
    %v172 = vld [vmem:[#allocation5] sm:$0xf]
    %v173 = vld [vmem:[#allocation5 + $0x4] sm:$0xf]
    %v174 = vld [vmem:[#allocation5 + $0x8] sm:$0xf]
    %v175 = vld [vmem:[#allocation5 + $0xc] sm:$0xf]
    %v176 = vld [vmem:[#allocation5 + $0x10] sm:$0xf]
    %v177 = vld [vmem:[#allocation5 + $0x14] sm:$0xf]
    %v178 = vld [vmem:[#allocation5 + $0x18] sm:$0xf]
    %v179 = vld [vmem:[#allocation5 + $0x1c] sm:$0xf]
    %v180 = vld [vmem:[#allocation5 + $0x20] sm:$0xf]
    %v181 = vld [vmem:[#allocation5 + $0x24] sm:$0xf]
    %v182 = vld [vmem:[#allocation5 + $0x28] sm:$0xf]
    %v183 = vld [vmem:[#allocation5 + $0x2c] sm:$0xf]
    %v184 = vld [vmem:[#allocation5 + $0x30] sm:$0xf]
    %v185 = vld [vmem:[#allocation5 + $0x34] sm:$0xf]
    %v186 = vld [vmem:[#allocation5 + $0x38] sm:$0xf]
    %v187 = vld [vmem:[#allocation5 + $0x3c] sm:$0xf]
    %v188 = vld [vmem:[%s4] sm:$0x1]
    %v190 = vperm.slane %v188, 0
    %v208 = vunpack.c.l.b16 %v172
    %v209 = vunpack.c.l.b16 %v173
    %v210 = vunpack.c.l.b16 %v174
    %v211 = vunpack.c.l.b16 %v175
    %v212 = vunpack.c.l.b16 %v176
    %v213 = vunpack.c.l.b16 %v177
    %v214 = vunpack.c.l.b16 %v178
    %v215 = vunpack.c.l.b16 %v179
    %v216 = vunpack.c.l.b16 %v180
    %v217 = vunpack.c.l.b16 %v181
    %v218 = vunpack.c.l.b16 %v182
    %v219 = vunpack.c.l.b16 %v183
    %v220 = vunpack.c.l.b16 %v184
    %v221 = vunpack.c.l.b16 %v185
    %v222 = vunpack.c.l.b16 %v186
    %v223 = vunpack.c.l.b16 %v187
    %v224 = vpack.c.b16 %v209, %v208
    %v225 = vpack.c.b16 %v211, %v210
    %v226 = vpack.c.b16 %v213, %v212
    %v227 = vpack.c.b16 %v215, %v214
    %v228 = vpack.c.b16 %v217, %v216
    %v229 = vpack.c.b16 %v219, %v218
    %v230 = vpack.c.b16 %v221, %v220
    %v231 = vpack.c.b16 %v223, %v222
    %240 = vmatpush.bf16.msra.mxu0 %v231
    %241 = vmatpush.bf16.msra.mxu0 %v230
    %242 = vmatpush.bf16.msra.mxu0 %v229
    %243 = vmatpush.bf16.msra.mxu0 %v228
    %244 = vmatpush.bf16.msra.mxu0 %v227
    %245 = vmatpush.bf16.msra.mxu0 %v226
    %246 = vmatpush.bf16.msra.mxu0 %v225
    %247 = vmatpush.bf16.msra.mxu0 %v224
    %248 = vmatmul.bf16.gmra.mxu0 %v171
    %v249 = vpop.f32.mrf.mxu0
    %v250 = vadd.f32 %v190, %v249
    %v251 = vpop.f32.mrf.mxu0
    %252 = vdwg.mxu0
    %v253 = vld [vmem:[#allocation7] sm:$0xf]
    %v254 = vld [vmem:[#allocation7 + $0x4] sm:$0xf]
    %v255 = vld [vmem:[#allocation7 + $0x8] sm:$0xf]
    %v256 = vld [vmem:[#allocation7 + $0xc] sm:$0xf]
    %v257 = vld [vmem:[#allocation7 + $0x10] sm:$0xf]
    %v258 = vld [vmem:[#allocation7 + $0x14] sm:$0xf]
    %v259 = vld [vmem:[#allocation7 + $0x18] sm:$0xf]
    %v260 = vld [vmem:[#allocation7 + $0x1c] sm:$0xf]
    %v261 = vld [vmem:[#allocation7 + $0x20] sm:$0xf]
    %v262 = vld [vmem:[#allocation7 + $0x24] sm:$0xf]
    %v263 = vld [vmem:[#allocation7 + $0x28] sm:$0xf]
    %v264 = vld [vmem:[#allocation7 + $0x2c] sm:$0xf]
    %v265 = vld [vmem:[#allocation7 + $0x30] sm:$0xf]
    %v266 = vld [vmem:[#allocation7 + $0x34] sm:$0xf]
    %v267 = vld [vmem:[#allocation7 + $0x38] sm:$0xf]
    %v268 = vld [vmem:[#allocation7 + $0x3c] sm:$0xf]
    %v269 = vld [vmem:[%s6] sm:$0x1]
    %v271 = vperm.slane %v269, 0
    %v289 = vunpack.c.l.b16 %v253
    %v290 = vunpack.c.l.b16 %v254
    %v291 = vunpack.c.l.b16 %v255
    %v292 = vunpack.c.l.b16 %v256
    %v293 = vunpack.c.l.b16 %v257
    %v294 = vunpack.c.l.b16 %v258
    %v295 = vunpack.c.l.b16 %v259
    %v296 = vunpack.c.l.b16 %v260
    %v297 = vunpack.c.l.b16 %v261
    %v298 = vunpack.c.l.b16 %v262
    %v299 = vunpack.c.l.b16 %v263
    %v300 = vunpack.c.l.b16 %v264
    %v301 = vunpack.c.l.b16 %v265
    %v302 = vunpack.c.l.b16 %v266
    %v303 = vunpack.c.l.b16 %v267
    %v304 = vunpack.c.l.b16 %v268
    %v305 = vpack.c.b16 %v290, %v289
    %v306 = vpack.c.b16 %v292, %v291
    %v307 = vpack.c.b16 %v294, %v293
    %v308 = vpack.c.b16 %v296, %v295
    %v309 = vpack.c.b16 %v298, %v297
    %v310 = vpack.c.b16 %v300, %v299
    %v311 = vpack.c.b16 %v302, %v301
    %v312 = vpack.c.b16 %v304, %v303
    %321 = vmatpush.bf16.msra.mxu0 %v312
    %322 = vmatpush.bf16.msra.mxu0 %v311
    %323 = vmatpush.bf16.msra.mxu0 %v310
    %324 = vmatpush.bf16.msra.mxu0 %v309
    %325 = vmatpush.bf16.msra.mxu0 %v308
    %326 = vmatpush.bf16.msra.mxu0 %v307
    %327 = vmatpush.bf16.msra.mxu0 %v306
    %328 = vmatpush.bf16.msra.mxu0 %v305
    %329 = vmatmul.bf16.gmra.mxu0 %v171
    %v330 = vpop.f32.mrf.mxu0
    %v331 = vadd.f32 %v271, %v330
    %v332 = vpop.f32.mrf.mxu0
    %333 = vdwg.mxu0
    %v334 = vmul.f32 %v170, %v250
    %v335 = vsub.f32 1.0, %v170
    %v336 = vmul.f32 %v335, %v331
    %v337 = vadd.f32 %v334, %v336
    %338 = vst [vmem:[#allocation8] sm:$0xff] %v337
    // Predicated region
    $region42: #{ddcontrolflow_forward.1} parent=1 // pred_check
      _
    $region43: #{ddcontrolflow_forward.1} parent=1 // pred_check_branch
      %340 = sbr.rel (0) target = $region45
    $region44: #{ddcontrolflow_forward.1} parent=1 // pred_region
      %342 = vsyncadd [#allocation4], 0
      %s344 = sshll.u32 [#allocation8], 4
      %s345 = int_to_ptr.vmem [resolvable:$true] %s344
      %s346 = sshll.u32 %s7, 4
      %s347 = int_to_ptr.hbm [resolvable:$true] %s346
      %349 = dma.vmem_to_hbm [thread:$0]  %s345, 128, %s347, [#allocation4]
    $region45: #{ddcontrolflow_forward.1} parent=1 // pred_fallthru
      _
    // Predicated region
    $region46: #{ddcontrolflow_forward.1} parent=1 // pred_check
      _
    $region47: #{ddcontrolflow_forward.1} parent=1 // pred_check_branch
      %351 = sbr.rel (0) target = $region49
    $region48: #{ddcontrolflow_forward.1} parent=1 // pred_region
      %353 = dma.done [#allocation4], 128
    $region49: #{ddcontrolflow_forward.1} parent=1 // pred_fallthru
      _
    %354 = vsyncpa [#allocation3], 1
    %355 = vsyncpa [#allocation6], 1
    %356 = vsyncpa [#allocation4], 1

</llo_original>
